<compile_context>
chip_gen: v7x
topology: tpu7x:2x2x1
jax: 0.10.0
libtpu: 0.0.40
codegen_flags: <defaults>
</compile_context>

<pallas_src>
import math
import numpy as np
import jax
import jax.numpy as jnp
from jax.experimental import pallas as pl
from jax.experimental.pallas import tpu as pltpu

_EPS = 1e-5


# ---------------------------------------------------------------------------
# Kernels
# ---------------------------------------------------------------------------
def _batchnorm_kernel(x_ref, g_ref, b_ref, o_ref):
    # x_ref: (M, TD) f32   g_ref/b_ref: (1, TD)   o_ref: (M, TD)
    x = x_ref[...]
    m = x.shape[0]
    mean = jnp.sum(x, axis=0, keepdims=True) * (1.0 / m)            # (1, TD)
    diff = x - mean
    var = jnp.sum(diff * diff, axis=0, keepdims=True) * (1.0 / m)   # biased (BN training)
    inv = jax.lax.rsqrt(var + _EPS)                                  # EUP
    o_ref[...] = (diff * (inv * g_ref[...]) + b_ref[...]).astype(o_ref.dtype)


def _layernorm_kernel(x_ref, o_ref):
    # x_ref: (bs, gs*D) f32 ; per-row stats, unbiased variance (torch.var default).
    x = x_ref[...]
    n = x.shape[1]
    mean = jnp.sum(x, axis=1, keepdims=True) * (1.0 / n)             # (bs, 1)
    diff = x - mean
    var = jnp.sum(diff * diff, axis=1, keepdims=True) * (1.0 / (n - 1))
    o_ref[...] = (diff * jax.lax.rsqrt(var + _EPS)).astype(o_ref.dtype)


def _instancenorm_kernel(x_ref, g_ref, b_ref, o_ref):
    # x_ref: (bs, gs, D) f32 ; stats over gs per (batch, feature), biased var.
    # g_ref/b_ref: (1, 1, D)
    x = x_ref[...]
    n = x.shape[1]
    mean = jnp.sum(x, axis=1, keepdims=True) * (1.0 / n)             # (bs, 1, D)
    diff = x - mean
    var = jnp.sum(diff * diff, axis=1, keepdims=True) * (1.0 / n)
    inv = jax.lax.rsqrt(var + _EPS)
    o_ref[...] = (diff * (inv * g_ref[...]) + b_ref[...]).astype(o_ref.dtype)


# ---------------------------------------------------------------------------
# Wrapper
# ---------------------------------------------------------------------------
def normalization_forward(x, gamma=None, beta=None, normalization="batch"):
    """Forward pass of Normalization for a (bs, gs, embed_dim) input."""
    bs, gs, d = x.shape

    if normalization == "batch":
        m = bs * gs
        x2 = x.reshape(m, d)
        g2 = gamma.reshape(1, d).astype(x.dtype)
        b2 = beta.reshape(1, d).astype(x.dtype)
        # Lane-dense feature tiles (>=128 wide); one grid step at small embed_dim.
        tile_d = d if d <= 512 else 512
        assert d % tile_d == 0, "embed_dim must be a multiple of the feature tile"
        out = pl.pallas_call(
            _batchnorm_kernel,
            out_shape=jax.ShapeDtypeStruct((m, d), x.dtype),
            grid_spec=pltpu.PrefetchScalarGridSpec(
                num_scalar_prefetch=0,
                grid=(d // tile_d,),
                in_specs=[
                    pl.BlockSpec((m, tile_d), lambda j: (0, j)),
                    pl.BlockSpec((1, tile_d), lambda j: (0, j)),
                    pl.BlockSpec((1, tile_d), lambda j: (0, j)),
                ],
                out_specs=pl.BlockSpec((m, tile_d), lambda j: (0, j)),
            ),
            compiler_params=pltpu.CompilerParams(
                dimension_semantics=("parallel",)),
        )(x2, g2, b2)
        # TODO(synk): for production bs*gs too large for one VMEM column slab,
        # switch to a two-pass row-tiled reduction (sum/sumsq accumulators).
        return out.reshape(bs, gs, d)

    if normalization == "layer":
        x2 = x.reshape(bs, gs * d)  # lane-dense reduction axis
        out = pl.pallas_call(
            _layernorm_kernel,
            out_shape=jax.ShapeDtypeStruct((bs, gs * d), x.dtype),
            grid_spec=pltpu.PrefetchScalarGridSpec(
                num_scalar_prefetch=0,
                grid=(1,),
                in_specs=[pl.BlockSpec((bs, gs * d), lambda i: (0, 0))],
                out_specs=pl.BlockSpec((bs, gs * d), lambda i: (0, 0)),
            ),
        )(x2)
        return out.reshape(bs, gs, d)

    if normalization == "instance":
        g3 = gamma.reshape(1, 1, d).astype(x.dtype)
        b3 = beta.reshape(1, 1, d).astype(x.dtype)
        return pl.pallas_call(
            _instancenorm_kernel,
            out_shape=jax.ShapeDtypeStruct((bs, gs, d), x.dtype),
            grid_spec=pltpu.PrefetchScalarGridSpec(
                num_scalar_prefetch=0,
                grid=(1,),
                in_specs=[
                    pl.BlockSpec((bs, gs, d), lambda i: (0, 0, 0)),
                    pl.BlockSpec((1, 1, d), lambda i: (0, 0, 0)),
                    pl.BlockSpec((1, 1, d), lambda i: (0, 0, 0)),
                ],
                out_specs=pl.BlockSpec((bs, gs, d), lambda i: (0, 0, 0)),
            ),
        )(x, g3, b3)

    # Unknown normalizer type -> identity (matches the torch else-branch)
    return x


# ---------------------------------------------------------------------------
# Pure-JAX references (mirror the torch semantics)
# ---------------------------------------------------------------------------
def _batch_ref(x, gamma, beta):
    d = x.shape[-1]
    x2 = x.reshape(-1, d)
    mean = x2.mean(0)
    var = x2.var(0)                                    # biased (BN training-mode norm)
    return ((x2 - mean) / jnp.sqrt(var + _EPS) * gamma + beta).reshape(x.shape)


def _layer_ref(x):
    mean = x.mean((1, 2), keepdims=True)
    var = x.var((1, 2), keepdims=True, ddof=1)         # torch.var default: unbiased
    return (x - mean) / jnp.sqrt(var + _EPS)


def _instance_ref(x, gamma, beta):
    mean = x.mean(1, keepdims=True)
    var = x.var(1, keepdims=True)                      # biased (InstanceNorm)
    return (x - mean) / jnp.sqrt(var + _EPS) * gamma + beta


if __name__ == "__main__":
    embed_dim = 128      # lane-dense feature dim
    bs, gs = 2, 8

    key = jax.random.PRNGKey(0)
    kx, kg, kb = jax.random.split(key, 3)

    x = jax.random.normal(kx, (bs, gs, embed_dim), jnp.float32)

    # init_parameters(): each param ~ U(-stdv, stdv), stdv = 1/sqrt(param.size(-1))
    stdv = 1.0 / math.sqrt(embed_dim)
    gamma = jax.random.uniform(kg, (embed_dim,), jnp.float32, -stdv, stdv)
    beta = jax.random.uniform(kb, (embed_dim,), jnp.float32, -stdv, stdv)

    # default constructor argument is normalization='batch'
    y_batch = normalization_forward(x, gamma, beta, normalization="batch")
    y_layer = normalization_forward(x, normalization="layer")
    y_inst = normalization_forward(x, gamma, beta, normalization="instance")
    jax.block_until_ready((y_batch, y_layer, y_inst))

    np.testing.assert_allclose(np.asarray(y_batch), np.asarray(_batch_ref(x, gamma, beta)),
                               rtol=1e-5, atol=1e-5)
    np.testing.assert_allclose(np.asarray(y_layer), np.asarray(_layer_ref(x)),
                               rtol=1e-5, atol=1e-5)
    np.testing.assert_allclose(np.asarray(y_inst), np.asarray(_instance_ref(x, gamma, beta)),
                               rtol=1e-5, atol=1e-5)

    print("KERNEL_OK")
</pallas_src>

<mosaic_0001>
module attributes {stable_mosaic.version = 11 : i64} {
  func.func @_batchnorm_kernel(%arg0: i32, %arg1: memref<16x128xf32, #tpu.memory_space<vmem>>, %arg2: memref<1x128xf32, #tpu.memory_space<vmem>>, %arg3: memref<1x128xf32, #tpu.memory_space<vmem>>, %arg4: memref<16x128xf32, #tpu.memory_space<vmem>>) attributes {dimension_semantics = [#tpu.dimension_semantics<parallel>], iteration_bounds = array<i64: 1>, scalar_prefetch = 0 : i64, scratch_operands = 0 : i64, tpu.core_type = #tpu.core_type<tc>, window_params = [{transform_indices = @transform_0, window_bounds = array<i64: 16, 128>}, {transform_indices = @transform_1, window_bounds = array<i64: 1, 128>}, {transform_indices = @transform_2, window_bounds = array<i64: 1, 128>}, {transform_indices = @transform_3, window_bounds = array<i64: 16, 128>}]} {
    %c0 = arith.constant 0 : index
    %c0_0 = arith.constant 0 : index
    %0 = vector.load %arg1[%c0, %c0_0] : memref<16x128xf32, #tpu.memory_space<vmem>>, vector<16x128xf32>
    %cst = arith.constant dense<0.000000e+00> : vector<128xf32>
    %1 = vector.multi_reduction <add>, %0, %cst [0] : vector<16x128xf32> to vector<128xf32>
    %2 = vector.shape_cast %1 : vector<128xf32> to vector<1x128xf32>
    %cst_1 = arith.constant 6.250000e-02 : f32
    %3 = vector.broadcast %cst_1 : f32 to vector<1x128xf32>
    %4 = arith.mulf %2, %3 : vector<1x128xf32>
    %5 = vector.broadcast %4 : vector<1x128xf32> to vector<16x128xf32>
    %6 = arith.subf %0, %5 : vector<16x128xf32>
    %7 = arith.mulf %6, %6 : vector<16x128xf32>
    %cst_2 = arith.constant dense<0.000000e+00> : vector<128xf32>
    %8 = vector.multi_reduction <add>, %7, %cst_2 [0] : vector<16x128xf32> to vector<128xf32>
    %9 = vector.shape_cast %8 : vector<128xf32> to vector<1x128xf32>
    %cst_3 = arith.constant 6.250000e-02 : f32
    %10 = vector.broadcast %cst_3 : f32 to vector<1x128xf32>
    %11 = arith.mulf %9, %10 : vector<1x128xf32>
    %cst_4 = arith.constant 9.99999974E-6 : f32
    %12 = vector.broadcast %cst_4 : f32 to vector<1x128xf32>
    %13 = arith.addf %11, %12 : vector<1x128xf32>
    %14 = math.rsqrt %13 : vector<1x128xf32>
    %c0_5 = arith.constant 0 : index
    %c0_6 = arith.constant 0 : index
    %15 = vector.load %arg2[%c0_5, %c0_6] : memref<1x128xf32, #tpu.memory_space<vmem>>, vector<1x128xf32>
    %16 = arith.mulf %14, %15 : vector<1x128xf32>
    %17 = vector.broadcast %16 : vector<1x128xf32> to vector<16x128xf32>
    %18 = arith.mulf %6, %17 : vector<16x128xf32>
    %c0_7 = arith.constant 0 : index
    %c0_8 = arith.constant 0 : index
    %19 = vector.load %arg3[%c0_7, %c0_8] : memref<1x128xf32, #tpu.memory_space<vmem>>, vector<1x128xf32>
    %20 = vector.broadcast %19 : vector<1x128xf32> to vector<16x128xf32>
    %21 = arith.addf %18, %20 : vector<16x128xf32>
    %c0_9 = arith.constant 0 : index
    %c0_10 = arith.constant 0 : index
    %22 = vector.load %arg4[%c0_9, %c0_10] : memref<16x128xf32, #tpu.memory_space<vmem>>, vector<16x128xf32>
    tpu.vector_store %arg4[%c0_9, %c0_10], %21 {strides = array<i32>} : memref<16x128xf32, #tpu.memory_space<vmem>>, vector<16x128xf32>,
    return
  }
  func.func @transform_0(%arg0: i32) -> (i32, i32) {
    %c0_i32 = arith.constant 0 : i32
    %c0_i32_0 = arith.constant 0 : i32
    return %c0_i32, %arg0 : i32, i32
  }
  func.func @transform_1(%arg0: i32) -> (i32, i32) {
    %c0_i32 = arith.constant 0 : i32
    %c0_i32_0 = arith.constant 0 : i32
    return %c0_i32, %arg0 : i32, i32
  }
  func.func @transform_2(%arg0: i32) -> (i32, i32) {
    %c0_i32 = arith.constant 0 : i32
    %c0_i32_0 = arith.constant 0 : i32
    return %c0_i32, %arg0 : i32, i32
  }
  func.func @transform_3(%arg0: i32) -> (i32, i32) {
    %c0_i32 = arith.constant 0 : i32
    %c0_i32_0 = arith.constant 0 : i32
    return %c0_i32, %arg0 : i32, i32
  }
}

</mosaic_0001>

<llo_original>
// kernel: tpu_custom_call.1
$region0: #{tpu_custom_call.1}
  #allocation0 [shape = 'u32[]', space=smem, size = 0x4, offset = 0x4, fixed_abs, tag = 'smem constant byte address 0x4 - core index']
  #allocation1 [shape = 'u32[144,128]{1,0:T(1,128)}', space=vmem, size = 0x12000, scoped, tag = 'internal scratch']
  %s0 = inlined_call_operand.hbm [shape: f32[16,128], index: 0, kind: input, shape index: {}]
  %s1 = inlined_call_operand.vmem [shape: f32[1,128], index: 1, kind: input, shape index: {}]
  %s2 = inlined_call_operand.vmem [shape: f32[1,128], index: 2, kind: input, shape index: {}]
  %s3 = inlined_call_operand.hbm [shape: f32[16,128], index: 3, kind: output, shape index: {}]
  %s4 = sld [smem:[#allocation0]]
  $region26: #{tpu_custom_call.1} parent=0
    _
  %s6 = ssub.s32 1, %s4
  %s7 = scalar_select 0, %s6, %s4
  $region1: #{tpu_custom_call.1} parent=0
    #allocation2 [shape = 'u8[8192]{0}', space=vmem, size = 0x2000, scoped, tag = 'input window, operand 0, single buffered']
    #allocation3 [shape = 's32[1]{0}', space=sflag, size = 0x4, scoped, tag = 'scoped memory for tpu_custom_call.1']
    #allocation4 [shape = 's32[1]{0}', space=sflag, size = 0x4, scoped, tag = 'scoped memory for tpu_custom_call.1']
    #allocation5 [shape = 'u8[8192]{0}', space=vmem, size = 0x2000, scoped, tag = 'output window, operand 0, single buffered']
    %8 = vsyncpa [#allocation3], 0
    %9 = vsyncpa [#allocation4], 0
    // Predicated region
    $region2: #{tpu_custom_call.1} parent=1 // pred_check
      _
    $region3: #{tpu_custom_call.1} parent=1 // pred_check_branch
      %11 = sbr.rel (0) target = $region5
    $region4: #{tpu_custom_call.1} parent=1 // pred_region
      %s13 = ssub.s32 256, 256
      %14 = vsyncadd [#allocation3], %s13
      %s15 = sshll.u32 [#allocation2], 4
      %s16 = int_to_ptr.vmem [resolvable:$true] %s15
      %21 = dma.hbm_to_vmem [thread:$0]  %s0, 256, %s16, [#allocation3], 128, 128, 8
    $region5: #{tpu_custom_call.1} parent=1 // pred_fallthru
      _
    // Predicated region
    $region6: #{tpu_custom_call.1} parent=1 // pred_check
      _
    $region7: #{tpu_custom_call.1} parent=1 // pred_check_branch
      %23 = sbr.rel (0) target = $region9
    $region8: #{tpu_custom_call.1} parent=1 // pred_region
      _
    $region9: #{tpu_custom_call.1} parent=1 // pred_fallthru
      _
    // Predicated region
    $region10: #{tpu_custom_call.1} parent=1 // pred_check
      _
    $region11: #{tpu_custom_call.1} parent=1 // pred_check_branch
      %25 = sbr.rel (0) target = $region13
    $region12: #{tpu_custom_call.1} parent=1 // pred_region
      _
    $region13: #{tpu_custom_call.1} parent=1 // pred_fallthru
      _
    // Predicated region
    $region14: #{tpu_custom_call.1} parent=1 // pred_check
      _
    $region15: #{tpu_custom_call.1} parent=1 // pred_check_branch
      %27 = sbr.rel (0) target = $region17
    $region16: #{tpu_custom_call.1} parent=1 // pred_region
      %28 = dma.done [#allocation3], 256
    $region17: #{tpu_custom_call.1} parent=1 // pred_fallthru
      _
    %v29 = vld [vmem:[#allocation2] sm:$0xff]
    %v30 = vld [vmem:[#allocation2 + $0x8] sm:$0xff]
    %v31 = vadd.f32 %v29, %v30
    %v32 = vrot.slane %v31, 4
    %v33 = vadd.f32 %v31, %v32
    %v34 = vrot.slane %v33, 2
    %v35 = vadd.f32 %v33, %v34
    %v36 = vrot.slane %v35, 1
    %v37 = vadd.f32 %v35, %v36
    %v38 = vmul.f32 %v37, 0.0625
    %v39 = vsub.f32 %v29, %v38
    %v40 = vsub.f32 %v30, %v38
    %v41 = vmul.f32 %v39, %v39
    %v42 = vmul.f32 %v40, %v40
    %v43 = vadd.f32 %v41, %v42
    %v44 = vrot.slane %v43, 4
    %v45 = vadd.f32 %v43, %v44
    %v46 = vrot.slane %v45, 2
    %v47 = vadd.f32 %v45, %v46
    %v48 = vrot.slane %v47, 1
    %v49 = vadd.f32 %v47, %v48
    %v50 = vmul.f32 %v49, 0.0625
    %v51 = vadd.f32 %v50, 1e-05
    %v52 = vrsqrt.pop %v51
    %v53 = vld [vmem:[%s1] sm:$0x1]
    %v54 = vmul.f32 %v52, %v53
    %v55 = vlaneseq
    %v56 = vshrl.u32 %v55, 7
    %v57 = vsub.s32 0, %v56
    %v58 = vrot.slane %v54, %v57
    %v59 = vmul.f32 %v39, %v58
    %v60 = vmul.f32 %v40, %v58
    %v61 = vld [vmem:[%s2] sm:$0x1]
    %v63 = vlaneseq
    %v64 = vshrl.u32 %v63, 7
    %v65 = vsub.s32 0, %v64
    %v66 = vrot.slane %v61, %v65
    %v68 = vadd.f32 %v59, %v66
    %v69 = vadd.f32 %v60, %v66
    %70 = vst [vmem:[#allocation5] sm:$0xff] %v68
    %71 = vst [vmem:[#allocation5 + $0x8] sm:$0xff] %v69
    // Predicated region
    $region18: #{tpu_custom_call.1} parent=1 // pred_check
      _
    $region19: #{tpu_custom_call.1} parent=1 // pred_check_branch
      %73 = sbr.rel (0) target = $region21
    $region20: #{tpu_custom_call.1} parent=1 // pred_region
      %s75 = ssub.s32 256, 256
      %76 = vsyncadd [#allocation4], %s75
      %s77 = sshll.u32 [#allocation5], 4
      %s78 = int_to_ptr.vmem [resolvable:$true] %s77
      %83 = dma.vmem_to_hbm [thread:$0]  %s78, 256, %s3, [#allocation4], 128, 128, 8
    $region21: #{tpu_custom_call.1} parent=1 // pred_fallthru
      _
    // Predicated region
    $region22: #{tpu_custom_call.1} parent=1 // pred_check
      _
    $region23: #{tpu_custom_call.1} parent=1 // pred_check_branch
      %85 = sbr.rel (0) target = $region25
    $region24: #{tpu_custom_call.1} parent=1 // pred_region
      %86 = dma.done [#allocation4], 256
    $region25: #{tpu_custom_call.1} parent=1 // pred_fallthru
      _
    %87 = vsyncpa [#allocation3], 1
    %88 = vsyncpa [#allocation4], 1

</llo_original>
